<compile_context>
chip_gen: v7x
topology: tpu7x:2x2x1
jax: 0.10.0
libtpu: 0.0.40
codegen_flags: <defaults>
</compile_context>

<pallas_src>
import math

import jax
import jax.numpy as jnp
from jax.experimental import pallas as pl
from jax.experimental.pallas import tpu as pltpu

_LANES = 128


def _add_one_kernel(x_ref, o_ref):
    # Pure streaming VPU add; scalar 1 is cast to the input dtype.
    o_ref[...] = x_ref[...] + jnp.asarray(1, dtype=x_ref.dtype)


def _round_up(x: int, m: int) -> int:
    return ((x + m - 1) // m) * m


def _vmem_budget():
    """(target_block_bytes, vmem_limit_bytes) for the current TPU generation."""
    try:
        cap = getattr(pltpu.get_tpu_info(), "vmem_capacity_bytes", None)
    except Exception:
        cap = None
    if cap is None:
        return 4 * 1024 * 1024, 32 * 1024 * 1024          # safe everywhere
    if cap <= 80 * 1024 * 1024:                           # v7x: 64 MiB physical
        return 8 * 1024 * 1024, 48 * 1024 * 1024
    return 8 * 1024 * 1024, 64 * 1024 * 1024              # v5e/v6e: 128 MiB physical


def add_one(x: jax.Array, *, min_pallas_bytes: int = 512 * 1024) -> jax.Array:
    """Pallas TPU equivalent of `Modle.forward`: returns x + 1 for any rank."""
    one = jnp.asarray(1, dtype=x.dtype)
    itemsize = jnp.dtype(x.dtype).itemsize

    # Tiny / degenerate inputs: fixed launch + spec overhead dominates, the
    # XLA fused elementwise add is strictly faster on all generations.
    if x.ndim == 0 or x.size == 0 or x.size * itemsize < min_pallas_bytes:
        return x + one

    orig_shape = x.shape
    # Layout-preserving 3-D view (B, S, C): only dims above the trailing two
    # are collapsed, so this reshape does not trigger a relayout HBM pass.
    if x.ndim == 1:
        B, S, C = 1, 1, x.shape[0]
    elif x.ndim == 2:
        B, S, C = 1, x.shape[0], x.shape[1]
    else:
        B, S, C = int(math.prod(x.shape[:-2])), x.shape[-2], x.shape[-1]
    x3 = x.reshape(B, S, C)

    # Sublane packing granularity for the dtype (f32 -> 8, bf16 -> 16, i8 -> 32).
    sub = {4: 8, 2: 16, 1: 32}.get(itemsize, 8)
    s_pad = _round_up(S, sub)
    c_pad = _round_up(C, _LANES)   # VMEM pads the trailing two dims to (sub, 128)

    target, vmem_limit = _vmem_budget()

    # --- Pick (tile_b, tile_s, tile_c). Budget is the padded VMEM footprint of
    # one block (<= target); lanes are kept full whenever possible so stores
    # are full-width unmasked vst.
    if sub * c_pad * itemsize <= target:
        tile_c = C                                          # full lane width
        max_rows = (target // (c_pad * itemsize)) // sub * sub
        if max_rows >= S:
            tile_s = S
            tile_b = min(B, max(1, target // (s_pad * c_pad * itemsize)))
        else:
            tile_s = max(sub, max_rows)
            tile_b = 1
    else:
        # The last dim alone is wider than the block budget: tile lanes too.
        tile_s = min(S, sub)
        tile_c = max(_LANES, (target // (sub * itemsize)) // _LANES * _LANES)
        tile_b = 1

    grid = (pl.cdiv(B, tile_b), pl.cdiv(S, tile_s), pl.cdiv(C, tile_c))
    # Guarantee >= 2 grid steps when the data allows it: gives the pipeline
    # something to overlap and lets v7x's two TensorCores split the work.
    if grid[0] * grid[1] * grid[2] == 1:
        if B >= 2:
            tile_b = pl.cdiv(B, 2)
        elif S >= 2 * sub:
            tile_s = _round_up(pl.cdiv(S, 2), sub)
        elif C >= 2 * _LANES:
            tile_c = _round_up(pl.cdiv(C, 2), _LANES)
        grid = (pl.cdiv(B, tile_b), pl.cdiv(S, tile_s), pl.cdiv(C, tile_c))

    block = (tile_b, tile_s, tile_c)
    # Partial edge blocks (S % tile_s, C % tile_c, B % tile_b) are masked by
    # Pallas automatically; no jnp.pad / slice round-trips are needed.
    # TODO(synk): if xprof shows exposed DMA gaps between steps, sweep
    #             pipeline_mode=pl.Buffered(3) on the input BlockSpec.
    out3 = pl.pallas_call(
        _add_one_kernel,
        out_shape=jax.ShapeDtypeStruct((B, S, C), x.dtype),
        grid_spec=pltpu.PrefetchScalarGridSpec(
            num_scalar_prefetch=0,
            grid=grid,
            in_specs=[pl.BlockSpec(block, lambda i, j, k: (i, j, k))],
            out_specs=pl.BlockSpec(block, lambda i, j, k: (i, j, k)),
        ),
        compiler_params=pltpu.CompilerParams(
            dimension_semantics=("parallel", "parallel", "parallel"),
            vmem_limit_bytes=vmem_limit,
        ),
    )(x3)

    return out3.reshape(orig_shape)


if __name__ == "__main__":
    key = jax.random.PRNGKey(0)
    k1, k2, k3, k4 = jax.random.split(key, 4)

    # 1) NCHW-like f32 input with an awkward (non-128) last dim; force the
    #    Pallas path on this small shape with min_pallas_bytes=0.
    x = jax.random.normal(k1, (2, 4, 16, 16), dtype=jnp.float32)
    y = jax.block_until_ready(add_one(x, min_pallas_bytes=0))
    assert y.shape == x.shape and y.dtype == x.dtype
    assert jnp.array_equal(y, x + 1.0)

    # 2) lane-aligned (last dim % 128 == 0) bf16 input.
    xb = jax.random.normal(k2, (4, 64, 128), dtype=jnp.bfloat16)
    yb = jax.block_until_ready(add_one(xb, min_pallas_bytes=0))
    assert yb.shape == xb.shape and yb.dtype == xb.dtype
    assert jnp.array_equal(yb, xb + jnp.asarray(1, jnp.bfloat16))

    # 3) odd-sized rank-1 input (single masked block, no padding needed).
    x1 = jax.random.normal(k3, (37,), dtype=jnp.float32)
    y1 = jax.block_until_ready(add_one(x1, min_pallas_bytes=0))
    assert y1.shape == x1.shape and jnp.array_equal(y1, x1 + 1.0)

    # 4) default path: large enough (1 MiB) to skip the tiny-input bypass.
    x4 = jax.random.normal(k4, (8, 128, 256), dtype=jnp.float32)
    y4 = jax.block_until_ready(add_one(x4))
    assert jnp.array_equal(y4, x4 + 1.0)

    # 5) tiny-input bypass path (plain XLA add, integer dtype).
    x5 = jnp.arange(11, dtype=jnp.int32)
    assert jnp.array_equal(add_one(x5), x5 + 1)

    print("KERNEL_OK")
</pallas_src>

<mosaic_0001>
module attributes {stable_mosaic.version = 11 : i64} {
  func.func @_add_one_kernel(%arg0: i32, %arg1: i32, %arg2: i32, %arg3: memref<4x16x16xf32, #tpu.memory_space<vmem>>, %arg4: memref<4x16x16xf32, #tpu.memory_space<vmem>>) attributes {dimension_semantics = [#tpu.dimension_semantics<parallel>, #tpu.dimension_semantics<parallel>, #tpu.dimension_semantics<parallel>], iteration_bounds = array<i64: 2, 1, 1>, scalar_prefetch = 0 : i64, scratch_operands = 0 : i64, tpu.core_type = #tpu.core_type<tc>, window_params = [{transform_indices = @transform_0, window_bounds = array<i64: 4, 16, 16>}, {transform_indices = @transform_1, window_bounds = array<i64: 4, 16, 16>}]} {
    %c0 = arith.constant 0 : index
    %c0_0 = arith.constant 0 : index
    %c0_1 = arith.constant 0 : index
    %0 = vector.load %arg3[%c0, %c0_0, %c0_1] : memref<4x16x16xf32, #tpu.memory_space<vmem>>, vector<4x16x16xf32>
    %cst = arith.constant 1.000000e+00 : f32
    %1 = vector.broadcast %cst : f32 to vector<4x16x16xf32>
    %2 = arith.addf %0, %1 : vector<4x16x16xf32>
    %c0_2 = arith.constant 0 : index
    %c0_3 = arith.constant 0 : index
    %c0_4 = arith.constant 0 : index
    %3 = vector.load %arg4[%c0_2, %c0_3, %c0_4] : memref<4x16x16xf32, #tpu.memory_space<vmem>>, vector<4x16x16xf32>
    tpu.vector_store %arg4[%c0_2, %c0_3, %c0_4], %2 {strides = array<i32>} : memref<4x16x16xf32, #tpu.memory_space<vmem>>, vector<4x16x16xf32>,
    return
  }
  func.func @transform_0(%arg0: i32, %arg1: i32, %arg2: i32) -> (i32, i32, i32) {
    %c0_i32 = arith.constant 0 : i32
    return %arg0, %arg1, %arg2 : i32, i32, i32
  }
  func.func @transform_1(%arg0: i32, %arg1: i32, %arg2: i32) -> (i32, i32, i32) {
    %c0_i32 = arith.constant 0 : i32
    return %arg0, %arg1, %arg2 : i32, i32, i32
  }
}

</mosaic_0001>

<llo_original>
// kernel: tpu_custom_call.1
$region0: #{tpu_custom_call.1}
  #allocation0 [shape = 'u32[]', space=smem, size = 0x4, offset = 0x4, fixed_abs, tag = 'smem constant byte address 0x4 - core index']
  #allocation1 [shape = 'u32[144,128]{1,0:T(1,128)}', space=vmem, size = 0x12000, scoped, tag = 'internal scratch']
  %s0 = inlined_call_operand.hbm [shape: f32[8,16,16], index: 0, kind: input, shape index: {}]
  %s1 = inlined_call_operand.hbm [shape: f32[8,16,16], index: 1, kind: output, shape index: {}]
  %s2 = sld [smem:[#allocation0]]
  $region41: #{tpu_custom_call.1} parent=0
    _
  %s4 = ssub.s32 1, %s2
  %s5 = scalar_select 0, %s4, %s2
  $region1: #{tpu_custom_call.1} parent=0
    #allocation2 [shape = 'u8[65536]{0}', space=vmem, size = 0x10000, scoped, tag = 'input window, operand 0']
    #allocation3 [shape = 's32[2]{0}', space=sflag, size = 0x8, scoped, tag = 'scoped memory for tpu_custom_call.1']
    #allocation4 [shape = 's32[2]{0}', space=sflag, size = 0x8, scoped, tag = 'scoped memory for tpu_custom_call.1']
    #allocation5 [shape = 'u8[65536]{0}', space=vmem, size = 0x10000, scoped, tag = 'output window, operand 0']
    %6 = vsyncpa [#allocation3], 0
    %s7 = scalar_lea.sflag [#allocation3], 1
    %8 = vsyncpa %s7, 0
    %9 = vsyncpa [#allocation4], 0
    %s10 = scalar_lea.sflag [#allocation4], 1
    %11 = vsyncpa %s10, 0
    loop: start=0, step=1, limit=4
    $region2: #{tpu_custom_call.1} parent=1 // loop_pre_header
      _
    $region3: #{tpu_custom_call.1} parent=1 // loop_header
      %s13 = sphi 0, %s17
      %p14 = scmp.ge.s32.totalorder %s13, 4
      %s20 = sphi 0, %s39
      %s21 = sphi 0, %s35
      %s22 = sphi 0, %s31
      %s23 = sphi 0, %s20
      %s24 = sphi 0, %s21
      %s25 = sphi 0, %s22
      %s26 = sphi 0, %s23
      %s27 = sphi 0, %s24
      %s28 = sphi 0, %s25
      %s46 = sphi 0, %s48
      %s49 = sphi 0, %s46
      %s50 = sphi 0, %s49
      %s66 = sphi 0, %s50
      %s76 = sphi 0, %s78
      %s79 = sphi 0, %s76
      %s80 = sphi 0, %s79
      %s96 = sphi 0, %s80
    $region4: #{tpu_custom_call.1} parent=1 // loop_header_branch
      %16 = sbr.rel (%p14) target = $region8
    $region5: #{tpu_custom_call.1} parent=1 // loop_body
      %s18 = ssub.s32 %s13, 1
      %s19 = ssub.s32 %s13, 2
      %s29 = sadd.s32 1, %s22
      %p30 = scmp.ge.s32.totalorder %s29, 1
      %s31 = scalar_select %p30, 0, %s29
      %s32 = sadd.s32 1, %s21
      %s33 = scalar_select %p30, %s32, %s21
      %p34 = scmp.ge.s32.totalorder %s33, 1
      %s35 = scalar_select %p34, 0, %s33
      %s36 = sadd.s32 1, %s20
      %s37 = scalar_select %p34, %s36, %s20
      %p38 = scmp.ge.s32.totalorder %s37, 2
      %s39 = scalar_select %p38, 0, %s37
      %s40 = ssub.s32 %s20, %s39
      %s41 = ssub.s32 %s21, %s35
      %s42 = sor.u32 %s40, %s41
      %s43 = ssub.s32 %s22, %s31
      %s44 = sor.u32 %s42, %s43
      %p45 = scmp.eq.s32.totalorder %s44, 0
      %s47 = sadd.s32 %s46, 1
      %s48 = scalar_select %p45, %s46, %s47
      %p51 = pneg %p45
      %p52 = scmp.eq.s32.totalorder %s13, 1
      %p53 = por %p51, %p52
      %p54 = scmp.ne.s32.totalorder %s46, %s49
      %p55 = scmp.eq.s32.totalorder %s13, 0
      %p56 = por %p54, %p55
      %p57 = scmp.ne.s32.totalorder %s46, %s49
      %p58 = scmp.eq.s32.totalorder %s18, 1
      %p59 = por %p57, %p58
      %p60 = scmp.ne.s32.totalorder %s49, %s50
      %p61 = scmp.eq.s32.totalorder %s18, 0
      %p62 = por %p60, %p61
      %p63 = scmp.ne.s32.totalorder %s49, %s50
      %p64 = scmp.eq.s32.totalorder %s19, 1
      %p65 = por %p63, %p64
      %p67 = scmp.ne.s32.totalorder %s50, %s66
      %p68 = scmp.eq.s32.totalorder %s19, 0
      %p69 = por %p67, %p68
      %s70 = ssub.s32 %s20, %s39
      %s71 = ssub.s32 %s21, %s35
      %s72 = sor.u32 %s70, %s71
      %s73 = ssub.s32 %s22, %s31
      %s74 = sor.u32 %s72, %s73
      %p75 = scmp.eq.s32.totalorder %s74, 0
      %s77 = sadd.s32 %s76, 1
      %s78 = scalar_select %p75, %s76, %s77
      %p81 = pneg %p75
      %p82 = scmp.eq.s32.totalorder %s13, 1
      %p83 = por %p81, %p82
      %p84 = scmp.ne.s32.totalorder %s76, %s79
      %p85 = scmp.eq.s32.totalorder %s13, 0
      %p86 = por %p84, %p85
      %p87 = scmp.ne.s32.totalorder %s76, %s79
      %p88 = scmp.eq.s32.totalorder %s18, 1
      %p89 = por %p87, %p88
      %p90 = scmp.ne.s32.totalorder %s79, %s80
      %p91 = scmp.eq.s32.totalorder %s18, 0
      %p92 = por %p90, %p91
      %p93 = scmp.ne.s32.totalorder %s79, %s80
      %p94 = scmp.eq.s32.totalorder %s19, 1
      %p95 = por %p93, %p94
      %p97 = scmp.ne.s32.totalorder %s80, %s96
      %p98 = scmp.eq.s32.totalorder %s19, 0
      %p99 = por %p97, %p98
      %p100 = scmp.le.s32.totalorder 1, %s13
      %p101 = scmp.lt.s32.totalorder %s13, 3
      %p102 = pnand %p100, %p101
      %p103 = pneg %p102
      // Predicated region
      $region9: #{tpu_custom_call.1} parent=5 // pred_check
        _
      $region10: #{tpu_custom_call.1} parent=5 // pred_check_branch
        %105 = sbr.rel (%p102) target = $region12
      $region11: #{tpu_custom_call.1} parent=5 // pred_region
        %s106 = ssub.s32 %s13, 1
      $region12: #{tpu_custom_call.1} parent=5 // pred_fallthru
        _
      %p107 = scmp.lt.s32.totalorder %s13, 2
      // Predicated region
      $region13: #{tpu_custom_call.1} parent=5 // pred_check
        %p108 = pneg %p107
      $region14: #{tpu_custom_call.1} parent=5 // pred_check_branch
        %110 = sbr.rel (%p108) target = $region16
      $region15: #{tpu_custom_call.1} parent=5 // pred_region
        // Predicated region
        $region17: #{tpu_custom_call.1} parent=15 // pred_check
          %p111 = pneg %p56
        $region18: #{tpu_custom_call.1} parent=15 // pred_check_branch
          %113 = sbr.rel (%p111) target = $region20
        $region19: #{tpu_custom_call.1} parent=15 // pred_region
          %s114 = sand.u32 %s46, 1
          %s115 = scalar_lea.sflag [#allocation3], %s114
          %s116 = sand.u32 %s46, 1
          %s117 = smul.addr %s116, 64
          %s118 = scalar_lea.vmem [#allocation2], %s117
          %s119 = smul.u32 4, %s20
          %s120 = smul.u32 2, %s21
          %s122 = ssub.s32 1024, 1024
          %123 = vsyncadd %s115, %s122
          %s124 = sadd.s32 %s22, %s120
          %s125 = smul.addr %s119, 2
          %s126 = sadd.s32 %s124, %s125
          %s127 = smul.addr %s126, 128
          %s128 = scalar_lea.hbm %s0, %s127
          %s129 = sshll.u32 %s118, 4
          %s130 = int_to_ptr.vmem [resolvable:$true] %s129
          %135 = dma.hbm_to_vmem [thread:$0]  %s128, 1024, %s130, %s115, 128, 128, 8
        $region20: #{tpu_custom_call.1} parent=15 // pred_fallthru
          _
      $region16: #{tpu_custom_call.1} parent=5 // pred_fallthru
        _
      %p136 = scmp.le.s32.totalorder 1, %s13
      %p137 = scmp.lt.s32.totalorder %s13, 3
      %p138 = pnand %p136, %p137
      %p139 = pneg %p138
      // Predicated region
      $region21: #{tpu_custom_call.1} parent=5 // pred_check
        _
      $region22: #{tpu_custom_call.1} parent=5 // pred_check_branch
        %141 = sbr.rel (%p138) target = $region24
      $region23: #{tpu_custom_call.1} parent=5 // pred_region
        %s142 = ssub.s32 %s13, 1
        %s143 = sand.u32 %s49, 1
        %s144 = scalar_lea.sflag [#allocation3], %s143
        %s145 = sand.u32 %s49, 1
        %s146 = smul.addr %s145, 64
        %s147 = scalar_lea.vmem [#allocation2], %s146
        // Predicated region
        $region25: #{tpu_custom_call.1} parent=23 // pred_check
          %p148 = pneg %p62
        $region26: #{tpu_custom_call.1} parent=23 // pred_check_branch
          %150 = sbr.rel (%p148) target = $region28
        $region27: #{tpu_custom_call.1} parent=23 // pred_region
          %151 = dma.done %s144, 1024
        $region28: #{tpu_custom_call.1} parent=23 // pred_fallthru
          _
        %s152 = sand.u32 %s49, 1
        %s153 = scalar_lea.sflag [#allocation3], %s152
        %s154 = sand.u32 %s49, 1
        %s155 = smul.addr %s154, 64
        %s156 = scalar_lea.vmem [#allocation2], %s155
        %p157 = pneg %p62
        %p158 = pneg %p59
        %p159 = pneg %p92
        %p160 = pneg %p89
        %s161 = sand.u32 %s79, 1
        %s162 = scalar_lea.sflag [#allocation4], %s161
        %s163 = sand.u32 %s79, 1
        %s164 = smul.addr %s163, 64
        %s165 = scalar_lea.vmem [#allocation5], %s164
        %s166 = smul.u32 4, %s23
        %s167 = smul.u32 2, %s24
        %s168 = smul.u32 4, %s23
        %s169 = smul.u32 2, %s24
        %v170 = vld [vmem:[%s147] sm:$0xff]
        %v171 = vld [vmem:[%s147 + $0x8] sm:$0xff]
        %v172 = vld [vmem:[%s147 + $0x10] sm:$0xff]
        %v173 = vld [vmem:[%s147 + $0x18] sm:$0xff]
        %v174 = vld [vmem:[%s147 + $0x20] sm:$0xff]
        %v175 = vld [vmem:[%s147 + $0x28] sm:$0xff]
        %v176 = vld [vmem:[%s147 + $0x30] sm:$0xff]
        %v177 = vld [vmem:[%s147 + $0x38] sm:$0xff]
        %v178 = vadd.f32 %v170, 1.0
        %v179 = vadd.f32 %v171, 1.0
        %v180 = vadd.f32 %v172, 1.0
        %v181 = vadd.f32 %v173, 1.0
        %v182 = vadd.f32 %v174, 1.0
        %v183 = vadd.f32 %v175, 1.0
        %v184 = vadd.f32 %v176, 1.0
        %v185 = vadd.f32 %v177, 1.0
        %vm186 = vcmask 130048
        %187 = vst.msk [vmem:[%s165] sm:$0xff] %vm186, %v178
        %188 = vst.msk [vmem:[%s165 + $0x8] sm:$0xff] %vm186, %v179
        %189 = vst.msk [vmem:[%s165 + $0x10] sm:$0xff] %vm186, %v180
        %190 = vst.msk [vmem:[%s165 + $0x18] sm:$0xff] %vm186, %v181
        %191 = vst.msk [vmem:[%s165 + $0x20] sm:$0xff] %vm186, %v182
        %192 = vst.msk [vmem:[%s165 + $0x28] sm:$0xff] %vm186, %v183
        %193 = vst.msk [vmem:[%s165 + $0x30] sm:$0xff] %vm186, %v184
        %194 = vst.msk [vmem:[%s165 + $0x38] sm:$0xff] %vm186, %v185
        %s195 = sand.u32 %s79, 1
        %s196 = scalar_lea.sflag [#allocation4], %s195
        %s197 = sand.u32 %s79, 1
        %s198 = smul.addr %s197, 64
        %s199 = scalar_lea.vmem [#allocation5], %s198
        // Predicated region
        $region29: #{tpu_custom_call.1} parent=23 // pred_check
          %p200 = pneg %p89
        $region30: #{tpu_custom_call.1} parent=23 // pred_check_branch
          %202 = sbr.rel (%p200) target = $region32
        $region31: #{tpu_custom_call.1} parent=23 // pred_region
          %s203 = smul.u32 4, %s23
          %s204 = smul.u32 2, %s24
          %s206 = ssub.s32 1024, 1024
          %207 = vsyncadd %s196, %s206
          %s208 = sadd.s32 %s25, %s204
          %s209 = smul.addr %s203, 2
          %s210 = sadd.s32 %s208, %s209
          %s211 = smul.addr %s210, 128
          %s212 = scalar_lea.hbm %s1, %s211
          %s213 = sshll.u32 %s199, 4
          %s214 = int_to_ptr.vmem [resolvable:$true] %s213
          %219 = dma.vmem_to_hbm [thread:$0]  %s214, 1024, %s212, %s196, 128, 128, 8
        $region32: #{tpu_custom_call.1} parent=23 // pred_fallthru
          _
      $region24: #{tpu_custom_call.1} parent=5 // pred_fallthru
        _
      %p220 = scmp.le.s32.totalorder 2, %s13
      // Predicated region
      $region33: #{tpu_custom_call.1} parent=5 // pred_check
        %p221 = pneg %p220
      $region34: #{tpu_custom_call.1} parent=5 // pred_check_branch
        %223 = sbr.rel (%p221) target = $region36
      $region35: #{tpu_custom_call.1} parent=5 // pred_region
        %s224 = ssub.s32 %s13, 2
        // Predicated region
        $region37: #{tpu_custom_call.1} parent=35 // pred_check
          %p225 = pneg %p95
        $region38: #{tpu_custom_call.1} parent=35 // pred_check_branch
          %227 = sbr.rel (%p225) target = $region40
        $region39: #{tpu_custom_call.1} parent=35 // pred_region
          %s228 = sand.u32 %s80, 1
          %s229 = scalar_lea.sflag [#allocation4], %s228
          %s230 = sand.u32 %s80, 1
          %s231 = smul.addr %s230, 64
          %s232 = scalar_lea.vmem [#allocation5], %s231
          %233 = dma.done %s229, 1024
        $region40: #{tpu_custom_call.1} parent=35 // pred_fallthru
          _
      $region36: #{tpu_custom_call.1} parent=5 // pred_fallthru
        _
    $region6: #{tpu_custom_call.1} parent=1 // loop_footer
      %s17 = sadd.s32 1, %s13
    $region7: #{tpu_custom_call.1} parent=1 // loop_footer_branch
      %12 = sbr.rel target = $region3
    $region8: #{tpu_custom_call.1} parent=1 // loop_exit
      _
    %234 = vsyncpa [#allocation3], 1
    %s235 = scalar_lea.sflag [#allocation3], 1
    %236 = vsyncpa %s235, 1
    %237 = vsyncpa [#allocation4], 1
    %s238 = scalar_lea.sflag [#allocation4], 1
    %239 = vsyncpa %s238, 1

</llo_original>
